<compile_context>
chip_gen: v7x
topology: tpu7x:2x2x1
jax: 0.10.0
libtpu: 0.0.40
codegen_flags: <defaults>
</compile_context>

<pallas_src>
import functools
import math

import jax
import jax.numpy as jnp
from jax.experimental import pallas as pl
from jax.experimental.pallas import tpu as pltpu


def _vpu_has_bf16():
    """True on chips whose VALU executes packed bf16 (v6e, v7x).

    False on v5e and older (their VPU has no bf16 packing -- casts would only add
    work) and on non-TPU backends (e.g. interpret mode hosted on CPU).
    """
    try:
        kind = jax.devices()[0].device_kind.lower()
    except Exception:
        return False
    if "tpu" not in kind:
        return False
    return any(tag in kind for tag in ("v6", "v7", "7x"))


def _disc_kernel(x_ref, w1_ref, b1_ref, w2_ref, b2_ref, o_ref, *, use_bf16):
    # x_ref: (n_in, TB), w1_ref: (H, n_in), b1_ref/w2_ref: (H, 1), b2_ref: (1, 1),
    # o_ref: (1, TB).  Batch on lanes; all compute on VPU/XLU/EUP (MXU skipped).
    cdt = jnp.bfloat16 if use_bf16 else jnp.float32   # hot-loop dtype (v6e/v7x: bf16)
    n_in = x_ref.shape[0]                             # tiny and static (2)

    w1 = w1_ref[...].astype(cdt)                      # (H, n_in) resident, tiny
    b1 = b1_ref[...].astype(cdt)                      # (H, 1) -> broadcasts over lanes

    # Layer 1: broadcast FMAs.  Each x row comes straight off the ref via a pl.ds row
    # view (sublane-broadcast load path), not a materialized VALU copy.
    acc = None
    for k in range(n_in):
        xk = x_ref[pl.ds(k, 1), :].astype(cdt)        # (1, TB)
        term = w1[:, k:k + 1] * xk                    # (H, TB)
        acc = term if acc is None else acc + term
    h = jnp.maximum(acc + b1, 0)                      # ReLU, (H, TB)

    # Layer 2: weighted reduction across the hidden (sublane) axis -> XLU reduce;
    # accumulate in f32 regardless of the hot-loop dtype.
    w2 = w2_ref[...].astype(cdt)                      # (H, 1)
    z = jnp.sum((w2 * h).astype(jnp.float32), axis=0, keepdims=True) + b2_ref[...]

    # Exact sigmoid (exp on EUP).  No approximate reciprocal: the output may feed a
    # BCE/log loss and the approx path previously broke the 1e-3 correctness check.
    o_ref[...] = 1.0 / (1.0 + jnp.exp(-z))


def discriminator_forward_t(x_t, w1, b1, w2, b2, *, tile_b=65536, use_bf16=None):
    """Core entry point: x pre-transposed to (n_in, N); returns the (1, N) f32 slab.

    Use this directly if the producer/consumer can live with the transposed layout
    (eliminates the wrapper transpose/reshape passes entirely).
    """
    n_in, n = x_t.shape
    hidden = w1.shape[0]

    if use_bf16 is None:
        use_bf16 = _vpu_has_bf16()

    # Pad hidden to a multiple of 8 sublanes.  Zero-padded rows give h=0 after ReLU
    # and carry zero weight in w2, so the result is unchanged (exactly, even in bf16).
    hidden_p = ((hidden + 7) // 8) * 8
    f32 = jnp.float32
    w1_p = jnp.zeros((hidden_p, n_in), f32).at[:hidden].set(w1.astype(f32))
    b1_p = jnp.zeros((hidden_p, 1), f32).at[:hidden, 0].set(b1.astype(f32))
    w2_p = jnp.zeros((hidden_p, 1), f32).at[:hidden, 0].set(w2.reshape(-1).astype(f32))
    b2_p = b2.reshape(1, 1).astype(f32)

    # Batch tile: lane-aligned, as large as tile_b allows (amortizes the ~0.35 us
    # per-grid-step cost), but capped so the grid has >= 2 steps when there is enough
    # work (keeps both v7x TensorCores busy).  Double-buffered VMEM ~= 128*tile bytes
    # (x block (2,tile) and out block (1,tile) are each sublane-padded to 8), i.e.
    # ~8 MiB at the default tile -- comfortably inside the 32 MiB scoped default on
    # every generation, so no vmem_limit_bytes override is needed.
    # TODO(synk): if tiles beyond ~192K lanes are ever needed, fold batch onto
    # sublanes ((2,N)->(2,8,N/8)) to remove the 4-8x sublane-padding VMEM waste.
    lane = 128
    n_lanes = pl.cdiv(n, lane) * lane
    tile = min(int(tile_b), n_lanes)
    if n_lanes >= 2 * lane:
        tile = min(tile, ((n_lanes // 2 + lane - 1) // lane) * lane)  # grid >= 2
    tile = max(lane, (tile // lane) * lane)
    grid = (pl.cdiv(n, tile),)

    kernel = functools.partial(_disc_kernel, use_bf16=bool(use_bf16))

    # No explicit jnp.pad: a ragged final block's out-of-range lanes are computed on
    # unspecified data but masked on the output store, so results are unaffected.
    out = pl.pallas_call(
        kernel,
        out_shape=jax.ShapeDtypeStruct((1, n), jnp.float32),
        grid=grid,
        in_specs=[
            pl.BlockSpec((n_in, tile), lambda i: (0, i)),      # x tile (lane-dense)
            pl.BlockSpec((hidden_p, n_in), lambda i: (0, 0)),  # w1 (resident)
            pl.BlockSpec((hidden_p, 1), lambda i: (0, 0)),     # b1
            pl.BlockSpec((hidden_p, 1), lambda i: (0, 0)),     # w2 (as a column)
            pl.BlockSpec((1, 1), lambda i: (0, 0)),            # b2
        ],
        out_specs=pl.BlockSpec((1, tile), lambda i: (0, i)),   # lane-dense output
        compiler_params=pltpu.CompilerParams(
            dimension_semantics=("parallel",),                 # batch axis -> both TCs
        ),
        # Advisory only.  Kernel is VALU-bound (~15-19 flop/byte); bytes are tiny.
        cost_estimate=pl.CostEstimate(
            flops=int(n) * (2 * hidden * n_in + 4 * hidden + 8),
            transcendentals=2 * int(n),
            bytes_accessed=int(n) * (n_in * 4 + 4) + hidden_p * (n_in + 2) * 4 + 4,
        ),
    )(x_t, w1_p, b1_p, w2_p, b2_p)
    return out


def discriminator_forward(x, w1, b1, w2, b2, **kwargs):
    """Module-interface wrapper matching the PyTorch forward.

    x : (N, n_in) -> returns (N, 1).  The (N,2)->(2,N) transpose is the only
    wrapper-side data-movement pass (required by the module's row-major batch
    interface); the trailing (1,N)->(N,1) reshape is metadata-only (no copy) and
    there is no separate pad pass (Pallas masks the ragged tail block).
    """
    n = x.shape[0]
    out_f = w2.shape[0]
    out = discriminator_forward_t(x.astype(jnp.float32).T, w1, b1, w2, b2, **kwargs)
    return out.reshape(n, out_f)


def init_params(key, n_inputs=2, hidden=25, out_f=1):
    """Init mirroring the PyTorch module (kaiming_uniform_ on linear1.weight, default
    nn.Linear init elsewhere).  Weights returned in PyTorch (out, in) layout."""
    k1, k2, k3, k4 = jax.random.split(key, 4)

    # nn.init.kaiming_uniform_ default: a=0, fan_in mode, gain=sqrt(2)
    bound1 = math.sqrt(2.0) * math.sqrt(3.0 / n_inputs)
    w1 = jax.random.uniform(k1, (hidden, n_inputs), jnp.float32, -bound1, bound1)

    bb1 = 1.0 / math.sqrt(n_inputs)
    b1 = jax.random.uniform(k2, (hidden,), jnp.float32, -bb1, bb1)

    bw2 = 1.0 / math.sqrt(hidden)
    w2 = jax.random.uniform(k3, (out_f, hidden), jnp.float32, -bw2, bw2)
    b2 = jax.random.uniform(k4, (out_f,), jnp.float32, -bw2, bw2)
    return w1, b1, w2, b2


def reference_forward(x, w1, b1, w2, b2):
    h = jnp.maximum(x @ w1.T + b1, 0.0)
    return jax.nn.sigmoid(h @ w2.T + b2)


if __name__ == "__main__":
    key = jax.random.PRNGKey(0)
    kx, kp = jax.random.split(key)

    n_inputs = 2
    batch = 512                      # demo size; tile clamps to 256 -> grid of 2
    x = jax.random.normal(kx, (batch, n_inputs), jnp.float32)
    w1, b1, w2, b2 = init_params(kp, n_inputs=n_inputs)

    ref = reference_forward(x, w1, b1, w2, b2)

    # 1) Exact f32 path -- tight tolerance (only f32 associativity differences).
    out_f32 = jax.block_until_ready(
        discriminator_forward(x, w1, b1, w2, b2, use_bf16=False))
    assert out_f32.shape == (batch, 1), out_f32.shape
    assert jnp.allclose(out_f32, ref, atol=1e-5, rtol=1e-5), (out_f32[:4], ref[:4])

    # 2) Chip-default path (bf16 hot loop on v6e/v7x, f32 elsewhere).  Tolerance is
    #    sized for bf16 rounding (~2^-9 relative) propagated through a 25-term
    #    reduction and the sigmoid; the reduction and sigmoid themselves stay in f32.
    out_def = jax.block_until_ready(discriminator_forward(x, w1, b1, w2, b2))
    tol = 2e-2 if _vpu_has_bf16() else 1e-5
    assert out_def.shape == (batch, 1), out_def.shape
    assert jnp.allclose(out_def, ref, atol=tol, rtol=tol), (out_def[:4], ref[:4])

    print("KERNEL_OK")
</pallas_src>

<mosaic_0001>
module attributes {stable_mosaic.version = 11 : i64} {
  func.func @_disc_kernel(%arg0: i32, %arg1: memref<2x256xf32, #tpu.memory_space<vmem>>, %arg2: memref<32x2xf32, #tpu.memory_space<vmem>>, %arg3: memref<32x1xf32, #tpu.memory_space<vmem>>, %arg4: memref<32x1xf32, #tpu.memory_space<vmem>>, %arg5: memref<1x1xf32, #tpu.memory_space<vmem>>, %arg6: memref<1x256xf32, #tpu.memory_space<vmem>>) attributes {dimension_semantics = [#tpu.dimension_semantics<parallel>], iteration_bounds = array<i64: 2>, scalar_prefetch = 0 : i64, scratch_operands = 0 : i64, tpu.core_type = #tpu.core_type<tc>, window_params = [{transform_indices = @transform_0, window_bounds = array<i64: 2, 256>}, {pipeline_mode = #tpu.pipeline_mode<synchronous>, transform_indices = @transform_1, window_bounds = array<i64: 32, 2>}, {pipeline_mode = #tpu.pipeline_mode<synchronous>, transform_indices = @transform_2, window_bounds = array<i64: 32, 1>}, {pipeline_mode = #tpu.pipeline_mode<synchronous>, transform_indices = @transform_3, window_bounds = array<i64: 32, 1>}, {pipeline_mode = #tpu.pipeline_mode<synchronous>, transform_indices = @transform_4, window_bounds = array<i64: 1, 1>}, {transform_indices = @transform_5, window_bounds = array<i64: 1, 256>}]} {
    %c0 = arith.constant 0 : index
    %c0_0 = arith.constant 0 : index
    %0 = vector.load %arg2[%c0, %c0_0] : memref<32x2xf32, #tpu.memory_space<vmem>>, vector<32x2xf32>
    %c0_1 = arith.constant 0 : index
    %c0_2 = arith.constant 0 : index
    %1 = vector.load %arg3[%c0_1, %c0_2] : memref<32x1xf32, #tpu.memory_space<vmem>>, vector<32x1xf32>
    %c0_3 = arith.constant 0 : index
    %c0_4 = arith.constant 0 : index
    %2 = vector.load %arg1[%c0_3, %c0_4] : memref<2x256xf32, #tpu.memory_space<vmem>>, vector<1x256xf32>
    %3 = vector.extract_strided_slice %0 {offsets = [0, 0], sizes = [32, 1], strides = [1, 1]} : vector<32x2xf32> to vector<32x1xf32>
    %4 = vector.broadcast %3 : vector<32x1xf32> to vector<32x256xf32>
    %5 = vector.broadcast %2 : vector<1x256xf32> to vector<32x256xf32>
    %6 = arith.mulf %4, %5 : vector<32x256xf32>
    %c1 = arith.constant 1 : index
    %c0_5 = arith.constant 0 : index
    %7 = vector.load %arg1[%c1, %c0_5] : memref<2x256xf32, #tpu.memory_space<vmem>>, vector<1x256xf32>
    %8 = vector.extract_strided_slice %0 {offsets = [0, 1], sizes = [32, 1], strides = [1, 1]} : vector<32x2xf32> to vector<32x1xf32>
    %9 = vector.broadcast %8 : vector<32x1xf32> to vector<32x256xf32>
    %10 = vector.broadcast %7 : vector<1x256xf32> to vector<32x256xf32>
    %11 = arith.mulf %9, %10 : vector<32x256xf32>
    %12 = arith.addf %6, %11 : vector<32x256xf32>
    %13 = vector.broadcast %1 : vector<32x1xf32> to vector<32x256xf32>
    %14 = arith.addf %12, %13 : vector<32x256xf32>
    %cst = arith.constant 0.000000e+00 : f32
    %15 = vector.broadcast %cst : f32 to vector<32x256xf32>
    %16 = arith.maximumf %14, %15 : vector<32x256xf32>
    %c0_6 = arith.constant 0 : index
    %c0_7 = arith.constant 0 : index
    %17 = vector.load %arg4[%c0_6, %c0_7] : memref<32x1xf32, #tpu.memory_space<vmem>>, vector<32x1xf32>
    %18 = vector.broadcast %17 : vector<32x1xf32> to vector<32x256xf32>
    %19 = arith.mulf %18, %16 : vector<32x256xf32>
    %cst_8 = arith.constant dense<0.000000e+00> : vector<256xf32>
    %20 = vector.multi_reduction <add>, %19, %cst_8 [0] : vector<32x256xf32> to vector<256xf32>
    %21 = vector.shape_cast %20 : vector<256xf32> to vector<1x256xf32>
    %c0_9 = arith.constant 0 : index
    %c0_10 = arith.constant 0 : index
    %22 = vector.load %arg5[%c0_9, %c0_10] : memref<1x1xf32, #tpu.memory_space<vmem>>, vector<1x1xf32>
    %23 = vector.broadcast %22 : vector<1x1xf32> to vector<1x256xf32>
    %24 = arith.addf %21, %23 : vector<1x256xf32>
    %cst_11 = arith.constant 0.000000e+00 : f32
    %25 = vector.broadcast %cst_11 : f32 to vector<1x256xf32>
    %26 = arith.subf %25, %24 : vector<1x256xf32>
    %27 = math.exp %26 : vector<1x256xf32>
    %cst_12 = arith.constant 1.000000e+00 : f32
    %28 = vector.broadcast %cst_12 : f32 to vector<1x256xf32>
    %29 = arith.addf %28, %27 : vector<1x256xf32>
    %cst_13 = arith.constant 1.000000e+00 : f32
    %30 = vector.broadcast %cst_13 : f32 to vector<1x256xf32>
    %31 = arith.divf %30, %29 : vector<1x256xf32>
    %c0_14 = arith.constant 0 : index
    %c0_15 = arith.constant 0 : index
    %32 = vector.load %arg6[%c0_14, %c0_15] : memref<1x256xf32, #tpu.memory_space<vmem>>, vector<1x256xf32>
    tpu.vector_store %arg6[%c0_14, %c0_15], %31 {strides = array<i32>} : memref<1x256xf32, #tpu.memory_space<vmem>>, vector<1x256xf32>,
    return
  }
  func.func @transform_0(%arg0: i32) -> (i32, i32) {
    %c0_i32 = arith.constant 0 : i32
    %c0_i32_0 = arith.constant 0 : i32
    return %c0_i32, %arg0 : i32, i32
  }
  func.func @transform_1(%arg0: i32) -> (i32, i32) {
    %c0_i32 = arith.constant 0 : i32
    %c0_i32_0 = arith.constant 0 : i32
    %c0_i32_1 = arith.constant 0 : i32
    return %c0_i32, %c0_i32_0 : i32, i32
  }
  func.func @transform_2(%arg0: i32) -> (i32, i32) {
    %c0_i32 = arith.constant 0 : i32
    %c0_i32_0 = arith.constant 0 : i32
    %c0_i32_1 = arith.constant 0 : i32
    return %c0_i32, %c0_i32_0 : i32, i32
  }
  func.func @transform_3(%arg0: i32) -> (i32, i32) {
    %c0_i32 = arith.constant 0 : i32
    %c0_i32_0 = arith.constant 0 : i32
    %c0_i32_1 = arith.constant 0 : i32
    return %c0_i32, %c0_i32_0 : i32, i32
  }
  func.func @transform_4(%arg0: i32) -> (i32, i32) {
    %c0_i32 = arith.constant 0 : i32
    %c0_i32_0 = arith.constant 0 : i32
    %c0_i32_1 = arith.constant 0 : i32
    return %c0_i32, %c0_i32_0 : i32, i32
  }
  func.func @transform_5(%arg0: i32) -> (i32, i32) {
    %c0_i32 = arith.constant 0 : i32
    %c0_i32_0 = arith.constant 0 : i32
    return %c0_i32, %arg0 : i32, i32
  }
}

</mosaic_0001>

<llo_original>
// kernel: tpu_custom_call.1
$region0: #{tpu_custom_call.1}
  #allocation0 [shape = 'u32[]', space=smem, size = 0x4, offset = 0x4, fixed_abs, tag = 'smem constant byte address 0x4 - core index']
  #allocation1 [shape = 'u32[144,128]{1,0:T(1,128)}', space=vmem, size = 0x12000, scoped, tag = 'internal scratch']
  #allocation2 [shape = 'f32[1,1]{1,0:T(1,128)S(1)}', space=vmem, size = 0x200, scoped, tag = 'scoped memory for tpu_custom_call.1']
  %s0 = inlined_call_operand.vmem [shape: f32[2,512], index: 0, kind: input, shape index: {}]
  %s1 = inlined_call_operand.vmem [shape: f32[32,2], index: 1, kind: input, shape index: {}]
  %s2 = inlined_call_operand.vmem [shape: f32[32,1], index: 2, kind: input, shape index: {}]
  %s3 = inlined_call_operand.vmem [shape: f32[32,1], index: 3, kind: input, shape index: {}]
  %s4 = inlined_call_operand.<no memory space> [shape: f32[1,1], index: 4, kind: input, shape index: {}]
  %s5 = inlined_call_operand.hbm [shape: f32[1,512], index: 5, kind: output, shape index: {}]
  %s6 = sld [smem:[#allocation0]]
  $region53: #{tpu_custom_call.1} parent=0
    _
  %s8 = ssub.s32 1, %s6
  %s9 = scalar_select 0, %s8, %s6
  %v10 = vstv %s4
  %11 = vst [vmem:[#allocation2] sm:$0x1] %v10
  $region1: #{tpu_custom_call.1} parent=0
    #allocation3 [shape = 'u8[2048]{0}', space=vmem, size = 0x800, scoped, tag = 'output window, operand 0']
    #allocation4 [shape = 's32[2]{0}', space=sflag, size = 0x8, scoped, tag = 'scoped memory for tpu_custom_call.1']
    %12 = vsyncpa [#allocation4], 0
    %s13 = scalar_lea.sflag [#allocation4], 1
    %14 = vsyncpa %s13, 0
    loop: start=0, step=1, limit=4
    $region2: #{tpu_custom_call.1} parent=1 // loop_pre_header
      _
    $region3: #{tpu_custom_call.1} parent=1 // loop_header
      %s16 = sphi 0, %s20
      %p17 = scmp.ge.s32.totalorder %s16, 4
      %s26 = sphi 0, %s28
      %s29 = sphi 0, %s26
      %s30 = sphi 0, %s29
      %s46 = sphi 0, %s30
      %s50 = sphi 0, %s50
      %s52 = sphi 0, %s50
      %s53 = sphi 0, %s52
      %s67 = sphi 0, %s53
      %s71 = sphi 0, %s71
      %s73 = sphi 0, %s71
      %s74 = sphi 0, %s73
      %s88 = sphi 0, %s74
      %s92 = sphi 0, %s92
      %s94 = sphi 0, %s92
      %s95 = sphi 0, %s94
      %s109 = sphi 0, %s95
      %s113 = sphi 0, %s113
      %s115 = sphi 0, %s113
      %s116 = sphi 0, %s115
      %s130 = sphi 0, %s116
      %s136 = sphi 0, %s138
      %s139 = sphi 0, %s136
      %s140 = sphi 0, %s139
      %s156 = sphi 0, %s140
    $region4: #{tpu_custom_call.1} parent=1 // loop_header_branch
      %19 = sbr.rel (%p17) target = $region8
    $region5: #{tpu_custom_call.1} parent=1 // loop_body
      %s21 = ssub.s32 %s16, 1
      %s22 = ssub.s32 %s16, 2
      %s23 = sadd.s32 %s16, 1
      %s24 = ssub.s32 %s16, %s23
      %p25 = scmp.eq.s32.totalorder %s24, 0
      %s27 = sadd.s32 %s26, 1
      %s28 = scalar_select %p25, %s26, %s27
      %p31 = pneg %p25
      %p32 = scmp.eq.s32.totalorder %s16, 1
      %p33 = por %p31, %p32
      %p34 = scmp.ne.s32.totalorder %s26, %s29
      %p35 = scmp.eq.s32.totalorder %s16, 0
      %p36 = por %p34, %p35
      %p37 = scmp.ne.s32.totalorder %s26, %s29
      %p38 = scmp.eq.s32.totalorder %s21, 1
      %p39 = por %p37, %p38
      %p40 = scmp.ne.s32.totalorder %s29, %s30
      %p41 = scmp.eq.s32.totalorder %s21, 0
      %p42 = por %p40, %p41
      %p43 = scmp.ne.s32.totalorder %s29, %s30
      %p44 = scmp.eq.s32.totalorder %s22, 1
      %p45 = por %p43, %p44
      %p47 = scmp.ne.s32.totalorder %s30, %s46
      %p48 = scmp.eq.s32.totalorder %s22, 0
      %p49 = por %p47, %p48
      %s51 = sadd.s32 %s50, 1
      %p54 = scmp.eq.s32.totalorder %s16, 1
      %p55 = scmp.ne.s32.totalorder %s50, %s52
      %p56 = scmp.eq.s32.totalorder %s16, 0
      %p57 = por %p55, %p56
      %p58 = scmp.ne.s32.totalorder %s50, %s52
      %p59 = scmp.eq.s32.totalorder %s21, 1
      %p60 = por %p58, %p59
      %p61 = scmp.ne.s32.totalorder %s52, %s53
      %p62 = scmp.eq.s32.totalorder %s21, 0
      %p63 = por %p61, %p62
      %p64 = scmp.ne.s32.totalorder %s52, %s53
      %p65 = scmp.eq.s32.totalorder %s22, 1
      %p66 = por %p64, %p65
      %p68 = scmp.ne.s32.totalorder %s53, %s67
      %p69 = scmp.eq.s32.totalorder %s22, 0
      %p70 = por %p68, %p69
      %s72 = sadd.s32 %s71, 1
      %p75 = scmp.eq.s32.totalorder %s16, 1
      %p76 = scmp.ne.s32.totalorder %s71, %s73
      %p77 = scmp.eq.s32.totalorder %s16, 0
      %p78 = por %p76, %p77
      %p79 = scmp.ne.s32.totalorder %s71, %s73
      %p80 = scmp.eq.s32.totalorder %s21, 1
      %p81 = por %p79, %p80
      %p82 = scmp.ne.s32.totalorder %s73, %s74
      %p83 = scmp.eq.s32.totalorder %s21, 0
      %p84 = por %p82, %p83
      %p85 = scmp.ne.s32.totalorder %s73, %s74
      %p86 = scmp.eq.s32.totalorder %s22, 1
      %p87 = por %p85, %p86
      %p89 = scmp.ne.s32.totalorder %s74, %s88
      %p90 = scmp.eq.s32.totalorder %s22, 0
      %p91 = por %p89, %p90
      %s93 = sadd.s32 %s92, 1
      %p96 = scmp.eq.s32.totalorder %s16, 1
      %p97 = scmp.ne.s32.totalorder %s92, %s94
      %p98 = scmp.eq.s32.totalorder %s16, 0
      %p99 = por %p97, %p98
      %p100 = scmp.ne.s32.totalorder %s92, %s94
      %p101 = scmp.eq.s32.totalorder %s21, 1
      %p102 = por %p100, %p101
      %p103 = scmp.ne.s32.totalorder %s94, %s95
      %p104 = scmp.eq.s32.totalorder %s21, 0
      %p105 = por %p103, %p104
      %p106 = scmp.ne.s32.totalorder %s94, %s95
      %p107 = scmp.eq.s32.totalorder %s22, 1
      %p108 = por %p106, %p107
      %p110 = scmp.ne.s32.totalorder %s95, %s109
      %p111 = scmp.eq.s32.totalorder %s22, 0
      %p112 = por %p110, %p111
      %s114 = sadd.s32 %s113, 1
      %p117 = scmp.eq.s32.totalorder %s16, 1
      %p118 = scmp.ne.s32.totalorder %s113, %s115
      %p119 = scmp.eq.s32.totalorder %s16, 0
      %p120 = por %p118, %p119
      %p121 = scmp.ne.s32.totalorder %s113, %s115
      %p122 = scmp.eq.s32.totalorder %s21, 1
      %p123 = por %p121, %p122
      %p124 = scmp.ne.s32.totalorder %s115, %s116
      %p125 = scmp.eq.s32.totalorder %s21, 0
      %p126 = por %p124, %p125
      %p127 = scmp.ne.s32.totalorder %s115, %s116
      %p128 = scmp.eq.s32.totalorder %s22, 1
      %p129 = por %p127, %p128
      %p131 = scmp.ne.s32.totalorder %s116, %s130
      %p132 = scmp.eq.s32.totalorder %s22, 0
      %p133 = por %p131, %p132
      %s134 = ssub.s32 %s16, %s23
      %p135 = scmp.eq.s32.totalorder %s134, 0
      %s137 = sadd.s32 %s136, 1
      %s138 = scalar_select %p135, %s136, %s137
      %p141 = pneg %p135
      %p142 = scmp.eq.s32.totalorder %s16, 1
      %p143 = por %p141, %p142
      %p144 = scmp.ne.s32.totalorder %s136, %s139
      %p145 = scmp.eq.s32.totalorder %s16, 0
      %p146 = por %p144, %p145
      %p147 = scmp.ne.s32.totalorder %s136, %s139
      %p148 = scmp.eq.s32.totalorder %s21, 1
      %p149 = por %p147, %p148
      %p150 = scmp.ne.s32.totalorder %s139, %s140
      %p151 = scmp.eq.s32.totalorder %s21, 0
      %p152 = por %p150, %p151
      %p153 = scmp.ne.s32.totalorder %s139, %s140
      %p154 = scmp.eq.s32.totalorder %s22, 1
      %p155 = por %p153, %p154
      %p157 = scmp.ne.s32.totalorder %s140, %s156
      %p158 = scmp.eq.s32.totalorder %s22, 0
      %p159 = por %p157, %p158
      %p160 = scmp.le.s32.totalorder 1, %s16
      %p161 = scmp.lt.s32.totalorder %s16, 3
      %p162 = pnand %p160, %p161
      %p163 = pneg %p162
      // Predicated region
      $region9: #{tpu_custom_call.1} parent=5 // pred_check
        _
      $region10: #{tpu_custom_call.1} parent=5 // pred_check_branch
        %165 = sbr.rel (%p162) target = $region12
      $region11: #{tpu_custom_call.1} parent=5 // pred_region
        %s166 = ssub.s32 %s16, 1
        // Predicated region
        $region13: #{tpu_custom_call.1} parent=11 // pred_check
          %p167 = pneg %p63
        $region14: #{tpu_custom_call.1} parent=11 // pred_check_branch
          %169 = sbr.rel (%p167) target = $region16
        $region15: #{tpu_custom_call.1} parent=11 // pred_region
          _
        $region16: #{tpu_custom_call.1} parent=11 // pred_fallthru
          _
        // Predicated region
        $region17: #{tpu_custom_call.1} parent=11 // pred_check
          %p170 = pneg %p84
        $region18: #{tpu_custom_call.1} parent=11 // pred_check_branch
          %172 = sbr.rel (%p170) target = $region20
        $region19: #{tpu_custom_call.1} parent=11 // pred_region
          _
        $region20: #{tpu_custom_call.1} parent=11 // pred_fallthru
          _
        // Predicated region
        $region21: #{tpu_custom_call.1} parent=11 // pred_check
          %p173 = pneg %p105
        $region22: #{tpu_custom_call.1} parent=11 // pred_check_branch
          %175 = sbr.rel (%p173) target = $region24
        $region23: #{tpu_custom_call.1} parent=11 // pred_region
          _
        $region24: #{tpu_custom_call.1} parent=11 // pred_fallthru
          _
        // Predicated region
        $region25: #{tpu_custom_call.1} parent=11 // pred_check
          %p176 = pneg %p126
        $region26: #{tpu_custom_call.1} parent=11 // pred_check_branch
          %178 = sbr.rel (%p176) target = $region28
        $region27: #{tpu_custom_call.1} parent=11 // pred_region
          _
        $region28: #{tpu_custom_call.1} parent=11 // pred_fallthru
          _
      $region12: #{tpu_custom_call.1} parent=5 // pred_fallthru
        _
      %p179 = scmp.lt.s32.totalorder %s16, 2
      // Predicated region
      $region29: #{tpu_custom_call.1} parent=5 // pred_check
        %p180 = pneg %p179
      $region30: #{tpu_custom_call.1} parent=5 // pred_check_branch
        %182 = sbr.rel (%p180) target = $region32
      $region31: #{tpu_custom_call.1} parent=5 // pred_region
        // Predicated region
        $region33: #{tpu_custom_call.1} parent=31 // pred_check
          %p183 = pneg %p36
        $region34: #{tpu_custom_call.1} parent=31 // pred_check_branch
          %185 = sbr.rel (%p183) target = $region36
        $region35: #{tpu_custom_call.1} parent=31 // pred_region
          %s186 = smul.u32 2, %s16
          %p187 = scmp.lt.s32.totalorder %s186, 3
          %s188 = scalar_select %p187, %s186, 3
          %s189 = smul.addr %s188, 2
          %s190 = scalar_lea.vmem %s0, %s189
          %s191 = smul.u32 2, %s16
        $region36: #{tpu_custom_call.1} parent=31 // pred_fallthru
          _
      $region32: #{tpu_custom_call.1} parent=5 // pred_fallthru
        _
      %p192 = scmp.le.s32.totalorder 1, %s16
      %p193 = scmp.lt.s32.totalorder %s16, 3
      %p194 = pnand %p192, %p193
      %p195 = pneg %p194
      // Predicated region
      $region37: #{tpu_custom_call.1} parent=5 // pred_check
        _
      $region38: #{tpu_custom_call.1} parent=5 // pred_check_branch
        %197 = sbr.rel (%p194) target = $region40
      $region39: #{tpu_custom_call.1} parent=5 // pred_region
        %s198 = ssub.s32 %s16, 1
        %s199 = smul.u32 2, %s21
        %p200 = scmp.lt.s32.totalorder %s199, 3
        %s201 = scalar_select %p200, %s199, 3
        %s202 = smul.addr %s201, 2
        %s203 = scalar_lea.vmem %s0, %s202
        %p204 = pneg %p42
        %p205 = pneg %p39
        %p206 = pneg %p63
        %p207 = pneg %p60
        %p208 = pneg %p84
        %p209 = pneg %p81
        %p210 = pneg %p105
        %p211 = pneg %p102
        %p212 = pneg %p126
        %p213 = pneg %p123
        %p214 = pneg %p152
        %p215 = pneg %p149
        %s216 = sand.u32 %s139, 1
        %s217 = scalar_lea.sflag [#allocation4], %s216
        %s218 = sand.u32 %s139, 1
        %s219 = smul.addr %s218, 2
        %s220 = scalar_lea.vmem [#allocation3], %s219
        %s221 = smul.u32 2, %s21
        %p222 = scmp.lt.s32.totalorder %s221, 3
        %s223 = scalar_select %p222, %s221, 3
        %s224 = smul.addr %s223, 2
        %s225 = scalar_lea.vmem %s0, %s224
        %s226 = smul.u32 2, %s21
        %s227 = smul.u32 2, %s21
        %v228 = vld [vmem:[%s1] sm:$0xff]
        %v229 = vld [vmem:[%s1 + $0x8] sm:$0xff]
        %v230 = vld [vmem:[%s1 + $0x10] sm:$0xff]
        %v231 = vld [vmem:[%s1 + $0x18] sm:$0xff]
        %v232 = vld [vmem:[%s2] sm:$0xff]
        %v233 = vld [vmem:[%s2 + $0x8] sm:$0xff]
        %v234 = vld [vmem:[%s2 + $0x10] sm:$0xff]
        %v235 = vld [vmem:[%s2 + $0x18] sm:$0xff]
        %v236 = vld [vmem:[%s225] ss:$2 sm:$0x3]
        %238 = vset.pattern.permute.xlu0 0
        %239 = vperm.xlu0 %238, %v228
        %v240 = vpop.permute.xlu0 %239
        %243 = vset.pattern.permute.xlu0 0
        %244 = vperm.xlu0 %243, %v229
        %v245 = vpop.permute.xlu0 %244
        %248 = vset.pattern.permute.xlu0 0
        %249 = vperm.xlu0 %248, %v230
        %v250 = vpop.permute.xlu0 %249
        %253 = vset.pattern.permute.xlu0 0
        %254 = vperm.xlu0 %253, %v231
        %v255 = vpop.permute.xlu0 %254
        %v258 = vlaneseq
        %v259 = vshrl.u32 %v258, 7
        %v260 = vsub.s32 0, %v259
        %v261 = vrot.slane %v236, %v260
        %v262 = vlaneseq
        %v263 = vshrl.u32 %v262, 7
        %v264 = vsub.s32 1, %v263
        %v265 = vrot.slane %v236, %v264
        %v268 = vmul.f32 %v240, %v261
        %v269 = vmul.f32 %v240, %v265
        %v270 = vmul.f32 %v245, %v261
        %v271 = vmul.f32 %v245, %v265
        %v272 = vmul.f32 %v250, %v261
        %v273 = vmul.f32 %v250, %v265
        %v274 = vmul.f32 %v255, %v261
        %v275 = vmul.f32 %v255, %v265
        %s276 = scalar_lea.vmem %s225, 1
        %v277 = vld [vmem:[%s276] ss:$2 sm:$0x3]
        %278 = vset.pattern.permute.xlu0 1
        %279 = vperm.xlu0 %278, %v228
        %v280 = vpop.permute.xlu0 %279
        %282 = vset.pattern.permute.xlu0 1
        %283 = vperm.xlu0 %282, %v229
        %v284 = vpop.permute.xlu0 %283
        %286 = vset.pattern.permute.xlu0 1
        %287 = vperm.xlu0 %286, %v230
        %v288 = vpop.permute.xlu0 %287
        %290 = vset.pattern.permute.xlu0 1
        %291 = vperm.xlu0 %290, %v231
        %v292 = vpop.permute.xlu0 %291
        %v295 = vlaneseq
        %v296 = vshrl.u32 %v295, 7
        %v297 = vsub.s32 0, %v296
        %v298 = vrot.slane %v277, %v297
        %v299 = vlaneseq
        %v300 = vshrl.u32 %v299, 7
        %v301 = vsub.s32 1, %v300
        %v302 = vrot.slane %v277, %v301
        %v305 = vmul.f32 %v280, %v298
        %v306 = vmul.f32 %v280, %v302
        %v307 = vmul.f32 %v284, %v298
        %v308 = vmul.f32 %v284, %v302
        %v309 = vmul.f32 %v288, %v298
        %v310 = vmul.f32 %v288, %v302
        %v311 = vmul.f32 %v292, %v298
        %v312 = vmul.f32 %v292, %v302
        %v313 = vadd.f32 %v268, %v305
        %v314 = vadd.f32 %v269, %v306
        %v315 = vadd.f32 %v270, %v307
        %v316 = vadd.f32 %v271, %v308
        %v317 = vadd.f32 %v272, %v309
        %v318 = vadd.f32 %v273, %v310
        %v319 = vadd.f32 %v274, %v311
        %v320 = vadd.f32 %v275, %v312
        %322 = vset.pattern.permute.xlu0 0
        %323 = vperm.xlu0 %322, %v232
        %v324 = vpop.permute.xlu0 %323
        %327 = vset.pattern.permute.xlu0 0
        %328 = vperm.xlu0 %327, %v233
        %v329 = vpop.permute.xlu0 %328
        %332 = vset.pattern.permute.xlu0 0
        %333 = vperm.xlu0 %332, %v234
        %v334 = vpop.permute.xlu0 %333
        %337 = vset.pattern.permute.xlu0 0
        %338 = vperm.xlu0 %337, %v235
        %v339 = vpop.permute.xlu0 %338
        %v341 = vadd.f32 %v313, %v324
        %v342 = vadd.f32 %v314, %v324
        %v343 = vadd.f32 %v315, %v329
        %v344 = vadd.f32 %v316, %v329
        %v345 = vadd.f32 %v317, %v334
        %v346 = vadd.f32 %v318, %v334
        %v347 = vadd.f32 %v319, %v339
        %v348 = vadd.f32 %v320, %v339
        %v349 = vmax.f32 %v341, 0.0
        %v350 = vmax.f32 %v342, 0.0
        %v351 = vmax.f32 %v343, 0.0
        %v352 = vmax.f32 %v344, 0.0
        %v353 = vmax.f32 %v345, 0.0
        %v354 = vmax.f32 %v346, 0.0
        %v355 = vmax.f32 %v347, 0.0
        %v356 = vmax.f32 %v348, 0.0
        %v357 = vld [vmem:[%s3] sm:$0xff]
        %v358 = vld [vmem:[%s3 + $0x8] sm:$0xff]
        %v359 = vld [vmem:[%s3 + $0x10] sm:$0xff]
        %v360 = vld [vmem:[%s3 + $0x18] sm:$0xff]
        %362 = vset.pattern.permute.xlu0 0
        %363 = vperm.xlu0 %362, %v357
        %v364 = vpop.permute.xlu0 %363
        %367 = vset.pattern.permute.xlu0 0
        %368 = vperm.xlu0 %367, %v358
        %v369 = vpop.permute.xlu0 %368
        %372 = vset.pattern.permute.xlu0 0
        %373 = vperm.xlu0 %372, %v359
        %v374 = vpop.permute.xlu0 %373
        %377 = vset.pattern.permute.xlu0 0
        %378 = vperm.xlu0 %377, %v360
        %v379 = vpop.permute.xlu0 %378
        %v381 = vmul.f32 %v364, %v349
        %v382 = vmul.f32 %v364, %v350
        %v383 = vmul.f32 %v369, %v351
        %v384 = vmul.f32 %v369, %v352
        %v385 = vmul.f32 %v374, %v353
        %v386 = vmul.f32 %v374, %v354
        %v387 = vmul.f32 %v379, %v355
        %v388 = vmul.f32 %v379, %v356
        %v389 = vadd.f32 %v381, %v383
        %v390 = vadd.f32 %v389, %v385
        %v391 = vadd.f32 %v390, %v387
        %v392 = vrot.slane %v391, 4
        %v393 = vadd.f32 %v391, %v392
        %v394 = vrot.slane %v393, 2
        %v395 = vadd.f32 %v393, %v394
        %v396 = vrot.slane %v395, 1
        %v397 = vadd.f32 %v395, %v396
        %v398 = vadd.f32 %v382, %v384
        %v399 = vadd.f32 %v398, %v386
        %v400 = vadd.f32 %v399, %v388
        %v401 = vrot.slane %v400, 4
        %v402 = vadd.f32 %v400, %v401
        %v403 = vrot.slane %v402, 2
        %v404 = vadd.f32 %v402, %v403
        %v405 = vrot.slane %v404, 1
        %v406 = vadd.f32 %v404, %v405
        %v407 = vld [vmem:[#allocation2] sm:$0x1]
        %409 = vset.pattern.permute.xlu0 0
        %410 = vperm.xlu0 %409, %v407
        %v411 = vpop.permute.xlu0 %410
        %v413 = vlaneseq
        %v414 = vshrl.u32 %v413, 7
        %v415 = vsub.s32 0, %v414
        %v416 = vrot.slane %v411, %v415
        %v417 = vadd.f32 %v397, %v416
        %v418 = vadd.f32 %v406, %v416
        %v419 = vsub.f32 0.0, %v417
        %v420 = vsub.f32 0.0, %v418
        %v421 = vmul.f32 %v419, 1.442695
        %v422 = vpow.pop %v421
        %v423 = vmul.f32 %v420, 1.442695
        %v424 = vpow.pop %v423
        %v425 = vadd.f32 %v422, 1.0
        %v426 = vadd.f32 %v424, 1.0
        %v427 = vrcp.pop %v425
        %v428 = vmul.f32 1.0, %v427
        %v429 = vrcp.pop %v426
        %v430 = vmul.f32 1.0, %v429
        %v433 = vcombine.low %v428, %v430
        %v435 = vunpack.c.l.s4 1966171168
        %v436 = vunpack.c.0.s8 %v435
        %v437 = vlaneseq
        %v438 = vshrl.u32 %v437, 7
        %v439 = vsub.s32 %v436, %v438
        %v440 = vrot.slane %v433, %v439
        %v442 = vunpack.c.l.s4 1966171168
        %v443 = vunpack.c.0.s8 %v442
        %v444 = vlaneseq
        %v445 = vshrl.u32 %v444, 7
        %v446 = vsub.s32 %v443, %v445
        %v447 = vrot.slane %v440, %v446
        %v449 = vlaneseq
        %vm450 = vcmp.ge.s32.totalorder %v449, 0
        %vm451 = vcmp.lt.s32.totalorder %v449, 256
        %vm452 = vmand %vm450, %vm451
        %453 = vst.msk [vmem:[%s220] sm:$0x3] %vm452, %v447
        %s454 = sand.u32 %s139, 1
        %s455 = scalar_lea.sflag [#allocation4], %s454
        %s456 = sand.u32 %s139, 1
        %s457 = smul.addr %s456, 2
        %s458 = scalar_lea.vmem [#allocation3], %s457
        // Predicated region
        $region41: #{tpu_custom_call.1} parent=39 // pred_check
          %p459 = pneg %p149
        $region42: #{tpu_custom_call.1} parent=39 // pred_check_branch
          %461 = sbr.rel (%p459) target = $region44
        $region43: #{tpu_custom_call.1} parent=39 // pred_region
          %s462 = smul.u32 2, %s21
          %s464 = ssub.s32 32, 32
          %465 = vsyncadd %s455, %s464
          %s466 = smul.addr %s462, 16
          %s467 = scalar_lea.hbm %s5, %s466
          %s469 = sshll.u32 %s458, 4
          %s470 = int_to_ptr.vmem [resolvable:$true] %s469
          %472 = dma.vmem_to_hbm [thread:$0]  %s470, 32, %s467, %s455
        $region44: #{tpu_custom_call.1} parent=39 // pred_fallthru
          _
      $region40: #{tpu_custom_call.1} parent=5 // pred_fallthru
        _
      %p473 = scmp.le.s32.totalorder 2, %s16
      // Predicated region
      $region45: #{tpu_custom_call.1} parent=5 // pred_check
        %p474 = pneg %p473
      $region46: #{tpu_custom_call.1} parent=5 // pred_check_branch
        %476 = sbr.rel (%p474) target = $region48
      $region47: #{tpu_custom_call.1} parent=5 // pred_region
        %s477 = ssub.s32 %s16, 2
        // Predicated region
        $region49: #{tpu_custom_call.1} parent=47 // pred_check
          %p478 = pneg %p155
        $region50: #{tpu_custom_call.1} parent=47 // pred_check_branch
          %480 = sbr.rel (%p478) target = $region52
        $region51: #{tpu_custom_call.1} parent=47 // pred_region
          %s481 = sand.u32 %s140, 1
          %s482 = scalar_lea.sflag [#allocation4], %s481
          %s483 = sand.u32 %s140, 1
          %s484 = smul.addr %s483, 2
          %s485 = scalar_lea.vmem [#allocation3], %s484
          %486 = dma.done %s482, 32
        $region52: #{tpu_custom_call.1} parent=47 // pred_fallthru
          _
      $region48: #{tpu_custom_call.1} parent=5 // pred_fallthru
        _
    $region6: #{tpu_custom_call.1} parent=1 // loop_footer
      %s20 = sadd.s32 1, %s16
    $region7: #{tpu_custom_call.1} parent=1 // loop_footer_branch
      %15 = sbr.rel target = $region3
    $region8: #{tpu_custom_call.1} parent=1 // loop_exit
      _
    %487 = vsyncpa [#allocation4], 1
    %s488 = scalar_lea.sflag [#allocation4], 1
    %489 = vsyncpa %s488, 1

</llo_original>
